<compile_context>
chip_gen: v7x
topology: tpu7x:2x2x1
jax: 0.10.0
libtpu: 0.0.40
codegen_flags: <defaults>
</compile_context>

<pallas_src>
import functools

import jax
import jax.numpy as jnp
import numpy as np
from jax.experimental import pallas as pl
from jax.experimental.pallas import tpu as pltpu

EPS = 1e-5
LANE = 128


def _round_up(x, m):
    return (x + m - 1) // m * m


def _cdiv(a, b):
    return (a + b - 1) // b


def _vmem_capacity_bytes():
    try:
        return int(pltpu.get_tpu_info().vmem_capacity_bytes)
    except Exception:
        return 64 * 1024 * 1024  # conservative: v7x per-TensorCore VMEM


# ---------------------------------------------------------------------------
# Pallas kernel: relu(patches @ W + shift), bf16 out, f32 accumulation.
# Shortcut / residual are pre-folded into the contraction by the host glue.
# ---------------------------------------------------------------------------
def _conv_bn_relu_kernel(p_ref, w_ref, shift_ref, o_ref):
    acc = jnp.dot(p_ref[...], w_ref[...], preferred_element_type=jnp.float32)
    o_ref[...] = jnp.maximum(acc + shift_ref[...], 0.0).astype(o_ref.dtype)


# ---------------------------------------------------------------------------
# pallas_call wrapper with generation-aware tiling
# ---------------------------------------------------------------------------
def fused_conv_bn(patches, w_scaled, shift, tm_max=1024):
    """relu(patches @ w_scaled + shift) -> bf16 [M, Coutc].

    patches:  [M, K]      bf16 im2col rows (shortcut rows may be concatenated
                          along K; K may carry zero lane-padding)
    w_scaled: [K, Coutc]  bf16, BN scale folded in (shortcut / identity rows
                          stacked under the conv weights)
    shift:    [1, Coutc]  f32 folded BN shift (+ shortcut shift)
    """
    M, K = patches.shape
    Coutc = w_scaled.shape[1]

    cap = _vmem_capacity_bytes()
    budget = max(16 * 1024 * 1024, int(cap * 0.45))      # ~57 MiB v5e/v6e, ~28 MiB v7x
    vmem_limit = min(int(cap * 0.75), 100 * 1024 * 1024)  # ~96 MiB v5e/v6e, 48 MiB v7x

    # ---- Cout tile: largest lane-multiple divisor whose double-buffered
    # weight tile fits a third of the budget (keeps weights bounded on v7x
    # without collapsing the M tile).
    if Coutc % LANE != 0:
        tn = Coutc                                   # small, unpadded channel width
    else:
        tn = LANE
        for d in range(Coutc, 0, -LANE):
            if Coutc % d == 0 and 2 * K * d * w_scaled.dtype.itemsize <= budget // 3:
                tn = d
                break

    def vmem_bytes(tm_):
        b = 2 * tm_ * K * patches.dtype.itemsize     # patch tile (double-buffered)
        b += 2 * K * tn * w_scaled.dtype.itemsize    # weight tile
        b += 2 * tn * shift.dtype.itemsize           # shift
        b += 2 * tm_ * tn * 2                        # bf16 output tile
        return b

    # ---- M tile: as large as the budget allows, but >= 4 grid steps so the
    # two v7x TensorCores stay load-balanced along the "parallel" M axis.
    tm = min(tm_max, _round_up(M, 8))
    if _cdiv(M, tm) < 4 and M > 32:
        tm = _round_up(_cdiv(M, 4), 8)
    while tm > 8 and vmem_bytes(tm) > budget:
        tm = _round_up(tm // 2, 8)

    # Pad rows so the grid divides evenly (padded rows are sliced off below).
    # TODO(synk): fold this pad into the im2col build / go implicit-GEMM.
    Mp = _round_up(M, tm)
    if Mp != M:
        patches = jnp.pad(patches, ((0, Mp - M), (0, 0)))

    grid = (Mp // tm, Coutc // tn)

    out = pl.pallas_call(
        _conv_bn_relu_kernel,
        out_shape=jax.ShapeDtypeStruct((Mp, Coutc), jnp.bfloat16),
        grid_spec=pltpu.PrefetchScalarGridSpec(
            num_scalar_prefetch=0,
            grid=grid,
            in_specs=[
                pl.BlockSpec((tm, K), lambda i, j: (i, 0)),   # patch rows
                pl.BlockSpec((K, tn), lambda i, j: (0, j)),   # scaled weights
                pl.BlockSpec((1, tn), lambda i, j: (0, j)),   # folded BN shift
            ],
            out_specs=pl.BlockSpec((tm, tn), lambda i, j: (i, j)),
        ),
        compiler_params=pltpu.CompilerParams(
            dimension_semantics=("parallel", "parallel"),
            vmem_limit_bytes=vmem_limit,
        ),
    )(patches, w_scaled, shift)
    return out[:M]


# ---------------------------------------------------------------------------
# Host-side glue
# ---------------------------------------------------------------------------
def im2col(x_nhwc, k, stride):
    """[N,H,W,C] -> [N*Ho*Wo, k*k*C], padding=(k-1)//2 (matches Conv2d). Keeps dtype."""
    N, H, W, C = x_nhwc.shape
    pad = (k - 1) // 2
    xp = jnp.pad(x_nhwc, ((0, 0), (pad, pad), (pad, pad), (0, 0)))
    Ho = (H + 2 * pad - k) // stride + 1
    Wo = (W + 2 * pad - k) // stride + 1
    cols = []
    for di in range(k):
        for dj in range(k):
            cols.append(xp[:, di:di + stride * Ho:stride,
                           dj:dj + stride * Wo:stride, :])
    p = jnp.stack(cols, axis=3)              # [N,Ho,Wo,k*k,C] (tap major, C minor)
    return p.reshape(N * Ho * Wo, k * k * C), (N, Ho, Wo)


def bn_fold(gamma, beta, mean, var, conv_bias):
    """Fold eval-mode BN + conv bias into per-channel scale/shift."""
    scale = gamma / jnp.sqrt(var + EPS)
    shift = beta + (conv_bias - mean) * scale
    return scale, shift


def _pad_lane(x, target):
    pad = target - x.shape[-1]
    if pad <= 0:
        return x
    cfg = [(0, 0)] * x.ndim
    cfg[-1] = (0, pad)
    return jnp.pad(x, cfg)


def _pack_contraction(p_parts, w_parts):
    """Concatenate patch pieces along K (and the matching weight rows along
    rows), zero-padding K to a lane multiple only when the overhead is <= 25%
    (a full-K block is legal, and skipping the pad avoids inflating HBM patch
    traffic for tiny channel counts). One concatenate per operand."""
    K = sum(p.shape[1] for p in p_parts)
    Kp = _round_up(K, LANE)
    if (Kp - K) * 4 > K:
        Kp = K
    if Kp != K:
        M = p_parts[0].shape[0]
        Cout = w_parts[0].shape[1]
        p_parts = list(p_parts) + [jnp.zeros((M, Kp - K), p_parts[0].dtype)]
        w_parts = list(w_parts) + [jnp.zeros((Kp - K, Cout), w_parts[0].dtype)]
    p = p_parts[0] if len(p_parts) == 1 else jnp.concatenate(p_parts, axis=1)
    w = w_parts[0] if len(w_parts) == 1 else jnp.concatenate(w_parts, axis=0)
    return p, w


@functools.partial(jax.jit, static_argnums=(2, 3))
def residual_block_forward(x_nchw, params, kernel_size, stride):
    k = kernel_size
    x = jnp.transpose(x_nchw, (0, 2, 3, 1)).astype(jnp.bfloat16)   # NCHW -> NHWC
    N, H, W, Cin = x.shape
    Cout = params["w1"].shape[-1]
    # Lane-pad the HBM-visible channel width only when it is worth it.
    Coutc = _round_up(Cout, LANE) if Cout >= 64 else Cout

    # ---- conv1 + BN1 + ReLU --------------------------------------------------
    p1, (_, Ho, Wo) = im2col(x, k, stride)
    s1, sh1 = bn_fold(params["g1"], params["be1"], params["m1"], params["v1"],
                      params["b1"])
    w1 = params["w1"].reshape(k * k * Cin, Cout) * s1[None, :]     # fold BN scale
    p1, w1 = _pack_contraction([p1], [w1])
    w1 = _pad_lane(w1, Coutc).astype(jnp.bfloat16)
    sh1 = _pad_lane(sh1.reshape(1, Cout), Coutc)
    y1 = fused_conv_bn(p1, w1, sh1)                                 # bf16 [M1, Coutc]
    y1_img = y1[:, :Cout].reshape(N, Ho, Wo, Cout)

    # ---- conv2 + BN2 + shortcut + residual add + final ReLU (one kernel) -----
    p2, _ = im2col(y1_img, k, 1)
    s2, sh2 = bn_fold(params["g2"], params["be2"], params["m2"], params["v2"],
                      params["b2"])
    w2 = params["w2"].reshape(k * k * Cout, Cout) * s2[None, :]

    if stride != 1 or Cin != Cout:
        # Projection shortcut (1x1 strided conv + BN): its rows are appended to
        # the conv2 patches along K and its scaled weights stacked under W2, so
        # the whole tail of the block is a single MXU matmul.
        # NOTE: the strided row selection assumes odd kernel_size with "same"
        # padding (Ho == ceil(H/stride)), which is what the module uses.
        xs = x[:, ::stride, ::stride, :][:, :Ho, :Wo, :].reshape(-1, Cin)
        ss, shs = bn_fold(params["gs"], params["bes"], params["ms"], params["vs"],
                          params["bs"])
        ws = params["ws"] * ss[None, :]                             # [Cin, Cout]
        p_cat, w_cat = _pack_contraction([p2, xs], [w2, ws])
        shift = (sh2 + shs).reshape(1, Cout)
    else:
        # Identity shortcut: append the (bf16) input rows with an identity
        # weight block — the residual add rides the same f32 MXU accumulation.
        xs = x.reshape(-1, Cin)
        p_cat, w_cat = _pack_contraction([p2, xs],
                                         [w2, jnp.eye(Cout, dtype=w2.dtype)])
        shift = sh2.reshape(1, Cout)

    w_cat = _pad_lane(w_cat, Coutc).astype(jnp.bfloat16)
    shift = _pad_lane(shift, Coutc)
    y2 = fused_conv_bn(p_cat, w_cat, shift)                         # bf16 [M2, Coutc]

    out = y2[:, :Cout].reshape(N, Ho, Wo, Cout)
    return jnp.transpose(out, (0, 3, 1, 2)).astype(jnp.float32)     # back to NCHW


# ---------------------------------------------------------------------------
# Pure-JAX reference (lax.conv, f32) for sanity checking
# ---------------------------------------------------------------------------
def reference_forward(x_nchw, params, k, stride):
    x = jnp.transpose(x_nchw, (0, 2, 3, 1)).astype(jnp.float32)
    pad = (k - 1) // 2

    def bn(y, g, be, m, v):
        return (y - m) / jnp.sqrt(v + EPS) * g + be

    dn = jax.lax.conv_dimension_numbers(x.shape, params["w1"].shape,
                                        ("NHWC", "HWIO", "NHWC"))
    y = jax.lax.conv_general_dilated(x, params["w1"], (stride, stride),
                                     [(pad, pad), (pad, pad)],
                                     dimension_numbers=dn) + params["b1"]
    y = jnp.maximum(bn(y, params["g1"], params["be1"], params["m1"], params["v1"]), 0.0)

    dn2 = jax.lax.conv_dimension_numbers(y.shape, params["w2"].shape,
                                         ("NHWC", "HWIO", "NHWC"))
    y2 = jax.lax.conv_general_dilated(y, params["w2"], (1, 1),
                                      [(pad, pad), (pad, pad)],
                                      dimension_numbers=dn2) + params["b2"]
    y2 = bn(y2, params["g2"], params["be2"], params["m2"], params["v2"])

    if "ws" in params:
        ws4 = params["ws"].reshape(1, 1, *params["ws"].shape)
        dns = jax.lax.conv_dimension_numbers(x.shape, ws4.shape,
                                             ("NHWC", "HWIO", "NHWC"))
        s = jax.lax.conv_general_dilated(x, ws4, (stride, stride),
                                         [(0, 0), (0, 0)],
                                         dimension_numbers=dns) + params["bs"]
        s = bn(s, params["gs"], params["bes"], params["ms"], params["vs"])
    else:
        s = x

    out = jnp.maximum(y2 + s, 0.0)
    return jnp.transpose(out, (0, 3, 1, 2))


def _make_params(key, Cin, Cout, k, with_proj):
    keys = jax.random.split(key, 18)
    p = {
        "w1": jax.random.normal(keys[0], (k, k, Cin, Cout), jnp.float32) * 0.1,
        "b1": jax.random.normal(keys[1], (Cout,), jnp.float32) * 0.1,
        "g1": 1.0 + 0.1 * jax.random.normal(keys[2], (Cout,), jnp.float32),
        "be1": 0.1 * jax.random.normal(keys[3], (Cout,), jnp.float32),
        "m1": 0.1 * jax.random.normal(keys[4], (Cout,), jnp.float32),
        "v1": 0.5 + jnp.abs(jax.random.normal(keys[5], (Cout,), jnp.float32)),
        "w2": jax.random.normal(keys[6], (k, k, Cout, Cout), jnp.float32) * 0.1,
        "b2": jax.random.normal(keys[7], (Cout,), jnp.float32) * 0.1,
        "g2": 1.0 + 0.1 * jax.random.normal(keys[8], (Cout,), jnp.float32),
        "be2": 0.1 * jax.random.normal(keys[9], (Cout,), jnp.float32),
        "m2": 0.1 * jax.random.normal(keys[10], (Cout,), jnp.float32),
        "v2": 0.5 + jnp.abs(jax.random.normal(keys[11], (Cout,), jnp.float32)),
    }
    if with_proj:
        p.update({
            "ws": jax.random.normal(keys[12], (Cin, Cout), jnp.float32) * 0.1,
            "bs": jax.random.normal(keys[13], (Cout,), jnp.float32) * 0.1,
            "gs": 1.0 + 0.1 * jax.random.normal(keys[14], (Cout,), jnp.float32),
            "bes": 0.1 * jax.random.normal(keys[15], (Cout,), jnp.float32),
            "ms": 0.1 * jax.random.normal(keys[16], (Cout,), jnp.float32),
            "vs": 0.5 + jnp.abs(jax.random.normal(keys[17], (Cout,), jnp.float32)),
        })
    return p


if __name__ == "__main__":
    key = jax.random.PRNGKey(0)
    k = 3
    # bf16 operands/outputs with f32 accumulation -> documented precision contract
    RTOL, ATOL = 3e-2, 3e-2

    # Case 1: projection shortcut (stride=2, Cin != Cout)
    N, Cin, H, W, Cout, stride = 2, 4, 16, 16, 8, 2
    kp, kx, key = jax.random.split(key, 3)
    params = _make_params(kp, Cin, Cout, k, with_proj=True)
    x = jax.random.normal(kx, (N, Cin, H, W), jnp.float32)
    out = jax.block_until_ready(residual_block_forward(x, params, k, stride))
    ref = jax.block_until_ready(reference_forward(x, params, k, stride))
    np.testing.assert_allclose(np.asarray(out), np.asarray(ref), rtol=RTOL, atol=ATOL)

    # Case 2: identity shortcut (stride=1, Cin == Cout)
    N, Cin, H, W, Cout, stride = 2, 8, 16, 16, 8, 1
    kp, kx = jax.random.split(key)
    params = _make_params(kp, Cin, Cout, k, with_proj=False)
    x = jax.random.normal(kx, (N, Cin, H, W), jnp.float32)
    out = jax.block_until_ready(residual_block_forward(x, params, k, stride))
    ref = jax.block_until_ready(reference_forward(x, params, k, stride))
    np.testing.assert_allclose(np.asarray(out), np.asarray(ref), rtol=RTOL, atol=ATOL)

    print("KERNEL_OK")
</pallas_src>

<mosaic_0001>
module attributes {stable_mosaic.version = 11 : i64} {
  func.func @_conv_bn_relu_kernel(%arg0: i32, %arg1: i32, %arg2: memref<32x36xbf16, #tpu.memory_space<vmem>>, %arg3: memref<36x8xbf16, #tpu.memory_space<vmem>>, %arg4: memref<1x8xf32, #tpu.memory_space<vmem>>, %arg5: memref<32x8xbf16, #tpu.memory_space<vmem>>) attributes {dimension_semantics = [#tpu.dimension_semantics<parallel>, #tpu.dimension_semantics<parallel>], iteration_bounds = array<i64: 4, 1>, scalar_prefetch = 0 : i64, scratch_operands = 0 : i64, tpu.core_type = #tpu.core_type<tc>, window_params = [{transform_indices = @transform_0, window_bounds = array<i64: 32, 36>}, {transform_indices = @transform_1, window_bounds = array<i64: 36, 8>}, {transform_indices = @transform_2, window_bounds = array<i64: 1, 8>}, {transform_indices = @transform_3, window_bounds = array<i64: 32, 8>}]} {
    %c0 = arith.constant 0 : index
    %c0_0 = arith.constant 0 : index
    %0 = vector.load %arg2[%c0, %c0_0] : memref<32x36xbf16, #tpu.memory_space<vmem>>, vector<32x36xbf16>
    %c0_1 = arith.constant 0 : index
    %c0_2 = arith.constant 0 : index
    %1 = vector.load %arg3[%c0_1, %c0_2] : memref<36x8xbf16, #tpu.memory_space<vmem>>, vector<36x8xbf16>
    %cst = arith.constant dense<0.000000e+00> : vector<32x8xf32>
    %2 = tpu.matmul %0, %1, %cst {dimension_numbers = #tpu.dot_dimension_numbers<[1], [0], [0], [1], [0, 0, 1, 1], [], []>} : vector<32x36xbf16>, vector<36x8xbf16>, vector<32x8xf32> -> vector<32x8xf32>
    %c0_3 = arith.constant 0 : index
    %c0_4 = arith.constant 0 : index
    %3 = vector.load %arg4[%c0_3, %c0_4] : memref<1x8xf32, #tpu.memory_space<vmem>>, vector<1x8xf32>
    %4 = vector.broadcast %3 : vector<1x8xf32> to vector<32x8xf32>
    %5 = arith.addf %2, %4 : vector<32x8xf32>
    %cst_5 = arith.constant 0.000000e+00 : f32
    %6 = vector.broadcast %cst_5 : f32 to vector<32x8xf32>
    %7 = arith.maximumf %5, %6 : vector<32x8xf32>
    %8 = arith.truncf %7 : vector<32x8xf32> to vector<32x8xbf16>
    %c0_6 = arith.constant 0 : index
    %c0_7 = arith.constant 0 : index
    %9 = vector.load %arg5[%c0_6, %c0_7] : memref<32x8xbf16, #tpu.memory_space<vmem>>, vector<32x8xbf16>
    tpu.vector_store %arg5[%c0_6, %c0_7], %8 {strides = array<i32>} : memref<32x8xbf16, #tpu.memory_space<vmem>>, vector<32x8xbf16>,
    return
  }
  func.func @transform_0(%arg0: i32, %arg1: i32) -> (i32, i32) {
    %c0_i32 = arith.constant 0 : i32
    %c0_i32_0 = arith.constant 0 : i32
    return %arg0, %c0_i32 : i32, i32
  }
  func.func @transform_1(%arg0: i32, %arg1: i32) -> (i32, i32) {
    %c0_i32 = arith.constant 0 : i32
    %c0_i32_0 = arith.constant 0 : i32
    return %c0_i32, %arg1 : i32, i32
  }
  func.func @transform_2(%arg0: i32, %arg1: i32) -> (i32, i32) {
    %c0_i32 = arith.constant 0 : i32
    %c0_i32_0 = arith.constant 0 : i32
    return %c0_i32, %arg1 : i32, i32
  }
  func.func @transform_3(%arg0: i32, %arg1: i32) -> (i32, i32) {
    %c0_i32 = arith.constant 0 : i32
    return %arg0, %arg1 : i32, i32
  }
}

module attributes {stable_mosaic.version = 11 : i64} {
  func.func @_conv_bn_relu_kernel(%arg0: i32, %arg1: i32, %arg2: memref<32x76xbf16, #tpu.memory_space<vmem>>, %arg3: memref<76x8xbf16, #tpu.memory_space<vmem>>, %arg4: memref<1x8xf32, #tpu.memory_space<vmem>>, %arg5: memref<32x8xbf16, #tpu.memory_space<vmem>>) attributes {dimension_semantics = [#tpu.dimension_semantics<parallel>, #tpu.dimension_semantics<parallel>], iteration_bounds = array<i64: 4, 1>, scalar_prefetch = 0 : i64, scratch_operands = 0 : i64, tpu.core_type = #tpu.core_type<tc>, window_params = [{transform_indices = @transform_0, window_bounds = array<i64: 32, 76>}, {transform_indices = @transform_1, window_bounds = array<i64: 76, 8>}, {transform_indices = @transform_2, window_bounds = array<i64: 1, 8>}, {transform_indices = @transform_3, window_bounds = array<i64: 32, 8>}]} {
    %c0 = arith.constant 0 : index
    %c0_0 = arith.constant 0 : index
    %0 = vector.load %arg2[%c0, %c0_0] : memref<32x76xbf16, #tpu.memory_space<vmem>>, vector<32x76xbf16>
    %c0_1 = arith.constant 0 : index
    %c0_2 = arith.constant 0 : index
    %1 = vector.load %arg3[%c0_1, %c0_2] : memref<76x8xbf16, #tpu.memory_space<vmem>>, vector<76x8xbf16>
    %cst = arith.constant dense<0.000000e+00> : vector<32x8xf32>
    %2 = tpu.matmul %0, %1, %cst {dimension_numbers = #tpu.dot_dimension_numbers<[1], [0], [0], [1], [0, 0, 1, 1], [], []>} : vector<32x76xbf16>, vector<76x8xbf16>, vector<32x8xf32> -> vector<32x8xf32>
    %c0_3 = arith.constant 0 : index
    %c0_4 = arith.constant 0 : index
    %3 = vector.load %arg4[%c0_3, %c0_4] : memref<1x8xf32, #tpu.memory_space<vmem>>, vector<1x8xf32>
    %4 = vector.broadcast %3 : vector<1x8xf32> to vector<32x8xf32>
    %5 = arith.addf %2, %4 : vector<32x8xf32>
    %cst_5 = arith.constant 0.000000e+00 : f32
    %6 = vector.broadcast %cst_5 : f32 to vector<32x8xf32>
    %7 = arith.maximumf %5, %6 : vector<32x8xf32>
    %8 = arith.truncf %7 : vector<32x8xf32> to vector<32x8xbf16>
    %c0_6 = arith.constant 0 : index
    %c0_7 = arith.constant 0 : index
    %9 = vector.load %arg5[%c0_6, %c0_7] : memref<32x8xbf16, #tpu.memory_space<vmem>>, vector<32x8xbf16>
    tpu.vector_store %arg5[%c0_6, %c0_7], %8 {strides = array<i32>} : memref<32x8xbf16, #tpu.memory_space<vmem>>, vector<32x8xbf16>,
    return
  }
  func.func @transform_0(%arg0: i32, %arg1: i32) -> (i32, i32) {
    %c0_i32 = arith.constant 0 : i32
    %c0_i32_0 = arith.constant 0 : i32
    return %arg0, %c0_i32 : i32, i32
  }
  func.func @transform_1(%arg0: i32, %arg1: i32) -> (i32, i32) {
    %c0_i32 = arith.constant 0 : i32
    %c0_i32_0 = arith.constant 0 : i32
    return %c0_i32, %arg1 : i32, i32
  }
  func.func @transform_2(%arg0: i32, %arg1: i32) -> (i32, i32) {
    %c0_i32 = arith.constant 0 : i32
    %c0_i32_0 = arith.constant 0 : i32
    return %c0_i32, %arg1 : i32, i32
  }
  func.func @transform_3(%arg0: i32, %arg1: i32) -> (i32, i32) {
    %c0_i32 = arith.constant 0 : i32
    return %arg0, %arg1 : i32, i32
  }
}

</mosaic_0001>

<llo_original>
// kernel: residual_block_forward.2
$region0: #{residual_block_forward.2}
  #allocation0 [shape = 'u32[]', space=smem, size = 0x4, offset = 0x4, fixed_abs, tag = 'smem constant byte address 0x4 - core index']
  #allocation1 [shape = 'u32[144,128]{1,0:T(1,128)}', space=vmem, size = 0x12000, scoped, tag = 'internal scratch']
  %s0 = inlined_call_operand.vmem [shape: bf16[128,36], index: 0, kind: input, shape index: {}]
  %s1 = inlined_call_operand.vmem [shape: bf16[36,8], index: 1, kind: input, shape index: {}]
  %s2 = inlined_call_operand.vmem [shape: f32[1,8], index: 2, kind: input, shape index: {}]
  %s3 = inlined_call_operand.vmem [shape: bf16[128,8], index: 3, kind: output, shape index: {}]
  %s4 = sld [smem:[#allocation0]]
  $region45: #{residual_block_forward.2} parent=0
    _
  %s6 = ssub.s32 1, %s4
  %s7 = scalar_select 0, %s6, %s4
  loop: start=0, step=1, limit=6
  $region2: #{residual_block_forward.2} parent=0 // loop_pre_header
    _
  $region3: #{residual_block_forward.2} parent=0 // loop_header
    %s9 = sphi 0, %s13
    %p10 = scmp.ge.s32.totalorder %s9, 6
    %s16 = sphi 0, %s28
    %s17 = sphi 0, %s24
    %s18 = sphi 0, %s16
    %s19 = sphi 0, %s17
    %s20 = sphi 0, %s18
    %s21 = sphi 0, %s19
    %s31 = sphi 0, %s33
    %s34 = sphi 0, %s31
    %s35 = sphi 0, %s34
    %s51 = sphi 0, %s35
    %s57 = sphi 0, %s59
    %s60 = sphi 0, %s57
    %s61 = sphi 0, %s60
    %s77 = sphi 0, %s61
    %s83 = sphi 0, %s85
    %s86 = sphi 0, %s83
    %s87 = sphi 0, %s86
    %s103 = sphi 0, %s87
    %s111 = sphi 0, %s113
    %s114 = sphi 0, %s111
    %s115 = sphi 0, %s114
    %s131 = sphi 0, %s115
  $region4: #{residual_block_forward.2} parent=0 // loop_header_branch
    %12 = sbr.rel (%p10) target = $region8
  $region5: #{residual_block_forward.2} parent=0 // loop_body
    %s14 = ssub.s32 %s9, 1
    %s15 = ssub.s32 %s9, 2
    %s22 = sadd.s32 1, %s17
    %p23 = scmp.ge.s32.totalorder %s22, 1
    %s24 = scalar_select %p23, 0, %s22
    %s25 = sadd.s32 1, %s16
    %s26 = scalar_select %p23, %s25, %s16
    %p27 = scmp.ge.s32.totalorder %s26, 4
    %s28 = scalar_select %p27, 0, %s26
    %s29 = ssub.s32 %s16, %s28
    %p30 = scmp.eq.s32.totalorder %s29, 0
    %s32 = sadd.s32 %s31, 1
    %s33 = scalar_select %p30, %s31, %s32
    %p36 = pneg %p30
    %p37 = scmp.eq.s32.totalorder %s9, 3
    %p38 = por %p36, %p37
    %p39 = scmp.ne.s32.totalorder %s31, %s34
    %p40 = scmp.eq.s32.totalorder %s9, 0
    %p41 = por %p39, %p40
    %p42 = scmp.ne.s32.totalorder %s31, %s34
    %p43 = scmp.eq.s32.totalorder %s14, 3
    %p44 = por %p42, %p43
    %p45 = scmp.ne.s32.totalorder %s34, %s35
    %p46 = scmp.eq.s32.totalorder %s14, 0
    %p47 = por %p45, %p46
    %p48 = scmp.ne.s32.totalorder %s34, %s35
    %p49 = scmp.eq.s32.totalorder %s15, 3
    %p50 = por %p48, %p49
    %p52 = scmp.ne.s32.totalorder %s35, %s51
    %p53 = scmp.eq.s32.totalorder %s15, 0
    %p54 = por %p52, %p53
    %s55 = ssub.s32 %s17, %s24
    %p56 = scmp.eq.s32.totalorder %s55, 0
    %s58 = sadd.s32 %s57, 1
    %s59 = scalar_select %p56, %s57, %s58
    %p62 = pneg %p56
    %p63 = scmp.eq.s32.totalorder %s9, 3
    %p64 = por %p62, %p63
    %p65 = scmp.ne.s32.totalorder %s57, %s60
    %p66 = scmp.eq.s32.totalorder %s9, 0
    %p67 = por %p65, %p66
    %p68 = scmp.ne.s32.totalorder %s57, %s60
    %p69 = scmp.eq.s32.totalorder %s14, 3
    %p70 = por %p68, %p69
    %p71 = scmp.ne.s32.totalorder %s60, %s61
    %p72 = scmp.eq.s32.totalorder %s14, 0
    %p73 = por %p71, %p72
    %p74 = scmp.ne.s32.totalorder %s60, %s61
    %p75 = scmp.eq.s32.totalorder %s15, 3
    %p76 = por %p74, %p75
    %p78 = scmp.ne.s32.totalorder %s61, %s77
    %p79 = scmp.eq.s32.totalorder %s15, 0
    %p80 = por %p78, %p79
    %s81 = ssub.s32 %s17, %s24
    %p82 = scmp.eq.s32.totalorder %s81, 0
    %s84 = sadd.s32 %s83, 1
    %s85 = scalar_select %p82, %s83, %s84
    %p88 = pneg %p82
    %p89 = scmp.eq.s32.totalorder %s9, 3
    %p90 = por %p88, %p89
    %p91 = scmp.ne.s32.totalorder %s83, %s86
    %p92 = scmp.eq.s32.totalorder %s9, 0
    %p93 = por %p91, %p92
    %p94 = scmp.ne.s32.totalorder %s83, %s86
    %p95 = scmp.eq.s32.totalorder %s14, 3
    %p96 = por %p94, %p95
    %p97 = scmp.ne.s32.totalorder %s86, %s87
    %p98 = scmp.eq.s32.totalorder %s14, 0
    %p99 = por %p97, %p98
    %p100 = scmp.ne.s32.totalorder %s86, %s87
    %p101 = scmp.eq.s32.totalorder %s15, 3
    %p102 = por %p100, %p101
    %p104 = scmp.ne.s32.totalorder %s87, %s103
    %p105 = scmp.eq.s32.totalorder %s15, 0
    %p106 = por %p104, %p105
    %s107 = ssub.s32 %s16, %s28
    %s108 = ssub.s32 %s17, %s24
    %s109 = sor.u32 %s107, %s108
    %p110 = scmp.eq.s32.totalorder %s109, 0
    %s112 = sadd.s32 %s111, 1
    %s113 = scalar_select %p110, %s111, %s112
    %p116 = pneg %p110
    %p117 = scmp.eq.s32.totalorder %s9, 3
    %p118 = por %p116, %p117
    %p119 = scmp.ne.s32.totalorder %s111, %s114
    %p120 = scmp.eq.s32.totalorder %s9, 0
    %p121 = por %p119, %p120
    %p122 = scmp.ne.s32.totalorder %s111, %s114
    %p123 = scmp.eq.s32.totalorder %s14, 3
    %p124 = por %p122, %p123
    %p125 = scmp.ne.s32.totalorder %s114, %s115
    %p126 = scmp.eq.s32.totalorder %s14, 0
    %p127 = por %p125, %p126
    %p128 = scmp.ne.s32.totalorder %s114, %s115
    %p129 = scmp.eq.s32.totalorder %s15, 3
    %p130 = por %p128, %p129
    %p132 = scmp.ne.s32.totalorder %s115, %s131
    %p133 = scmp.eq.s32.totalorder %s15, 0
    %p134 = por %p132, %p133
    %p135 = scmp.le.s32.totalorder 1, %s9
    %p136 = scmp.lt.s32.totalorder %s9, 5
    %p137 = pnand %p135, %p136
    %p138 = pneg %p137
    // Predicated region
    $region9: #{residual_block_forward.2} parent=5 // pred_check
      _
    $region10: #{residual_block_forward.2} parent=5 // pred_check_branch
      %140 = sbr.rel (%p137) target = $region12
    $region11: #{residual_block_forward.2} parent=5 // pred_region
      %s141 = ssub.s32 %s9, 1
      // Predicated region
      $region13: #{residual_block_forward.2} parent=11 // pred_check
        %p142 = pneg %p73
      $region14: #{residual_block_forward.2} parent=11 // pred_check_branch
        %144 = sbr.rel (%p142) target = $region16
      $region15: #{residual_block_forward.2} parent=11 // pred_region
        %p145 = scmp.lt.s32.totalorder %s19, 0
        %s146 = scalar_select %p145, %s19, 0
        %s147 = smul.addr %s146, 4
        %s148 = scalar_lea.vmem %s1, %s147
      $region16: #{residual_block_forward.2} parent=11 // pred_fallthru
        _
      // Predicated region
      $region17: #{residual_block_forward.2} parent=11 // pred_check
        %p149 = pneg %p99
      $region18: #{residual_block_forward.2} parent=11 // pred_check_branch
        %151 = sbr.rel (%p149) target = $region20
      $region19: #{residual_block_forward.2} parent=11 // pred_region
        %p152 = scmp.lt.s32.totalorder %s19, 0
        %s153 = scalar_select %p152, %s19, 0
        %s154 = scalar_lea.vmem %s2, %s153
      $region20: #{residual_block_forward.2} parent=11 // pred_fallthru
        _
    $region12: #{residual_block_forward.2} parent=5 // pred_fallthru
      _
    %p155 = scmp.lt.s32.totalorder %s9, 4
    // Predicated region
    $region21: #{residual_block_forward.2} parent=5 // pred_check
      %p156 = pneg %p155
    $region22: #{residual_block_forward.2} parent=5 // pred_check_branch
      %158 = sbr.rel (%p156) target = $region24
    $region23: #{residual_block_forward.2} parent=5 // pred_region
      // Predicated region
      $region25: #{residual_block_forward.2} parent=23 // pred_check
        %p159 = pneg %p41
      $region26: #{residual_block_forward.2} parent=23 // pred_check_branch
        %161 = sbr.rel (%p159) target = $region28
      $region27: #{residual_block_forward.2} parent=23 // pred_region
        %s162 = smul.u32 4, %s16
        %p163 = scmp.lt.s32.totalorder %s162, 15
        %s164 = scalar_select %p163, %s162, 15
        %s165 = smul.addr %s164, 4
        %s166 = scalar_lea.vmem %s0, %s165
        %s167 = smul.u32 4, %s16
      $region28: #{residual_block_forward.2} parent=23 // pred_fallthru
        _
    $region24: #{residual_block_forward.2} parent=5 // pred_fallthru
      _
    %p168 = scmp.le.s32.totalorder 1, %s9
    %p169 = scmp.lt.s32.totalorder %s9, 5
    %p170 = pnand %p168, %p169
    %p171 = pneg %p170
    // Predicated region
    $region29: #{residual_block_forward.2} parent=5 // pred_check
      _
    $region30: #{residual_block_forward.2} parent=5 // pred_check_branch
      %173 = sbr.rel (%p170) target = $region32
    $region31: #{residual_block_forward.2} parent=5 // pred_region
      %s174 = ssub.s32 %s9, 1
      %s175 = smul.u32 4, %s18
      %p176 = scmp.lt.s32.totalorder %s175, 15
      %s177 = scalar_select %p176, %s175, 15
      %s178 = smul.addr %s177, 4
      %s179 = scalar_lea.vmem %s0, %s178
      %p180 = pneg %p47
      %p181 = pneg %p44
      %p182 = scmp.lt.s32.totalorder %s19, 0
      %s183 = scalar_select %p182, %s19, 0
      %s184 = smul.addr %s183, 4
      %s185 = scalar_lea.vmem %s1, %s184
      %p186 = pneg %p73
      %p187 = pneg %p70
      %p188 = scmp.lt.s32.totalorder %s19, 0
      %s189 = scalar_select %p188, %s19, 0
      %s190 = scalar_lea.vmem %s2, %s189
      %p191 = pneg %p99
      %p192 = pneg %p96
      %p193 = pneg %p127
      %p194 = pneg %p124
      %s195 = smul.u32 4, %s18
      %p196 = scmp.lt.s32.totalorder %s195, 15
      %s197 = scalar_select %p196, %s195, 15
      %p198 = scmp.lt.s32.totalorder %s19, 0
      %s199 = scalar_select %p198, %s19, 0
      %s200 = sadd.s32 %s199, %s197
      %s201 = smul.addr %s200, 4
      %s202 = scalar_lea.vmem %s3, %s201
      %s203 = smul.u32 4, %s18
      %p204 = scmp.lt.s32.totalorder %s203, 15
      %s205 = scalar_select %p204, %s203, 15
      %s206 = smul.addr %s205, 4
      %s207 = scalar_lea.vmem %s0, %s206
      %s208 = smul.u32 4, %s18
      %p209 = scmp.lt.s32.totalorder %s19, 0
      %s210 = scalar_select %p209, %s19, 0
      %s211 = smul.addr %s210, 4
      %s212 = scalar_lea.vmem %s1, %s211
      %p213 = scmp.lt.s32.totalorder %s19, 0
      %s214 = scalar_select %p213, %s19, 0
      %s215 = scalar_lea.vmem %s2, %s214
      %s216 = smul.u32 4, %s18
      %p217 = scmp.lt.s32.totalorder %s216, 15
      %s218 = scalar_select %p217, %s216, 15
      %p219 = scmp.lt.s32.totalorder %s19, 0
      %s220 = scalar_select %p219, %s19, 0
      %s221 = sadd.s32 %s220, %s218
      %s222 = smul.addr %s221, 4
      %s223 = scalar_lea.vmem %s3, %s222
      %s224 = smul.u32 4, %s18
      %v226 = vld [vmem:[%s207] sm:$0xf]
      %v227 = vld [vmem:[%s207 + $0x4] sm:$0xf]
      %v228 = vld [vmem:[%s207 + $0x8] sm:$0xf]
      %v229 = vld [vmem:[%s207 + $0xc] sm:$0xf]
      %v230 = vld [vmem:[%s212] sm:$0xf]
      %v231 = vld [vmem:[%s212 + $0x4] sm:$0xf]
      %v232 = vld [vmem:[%s212 + $0x8] sm:$0xf]
      %v233 = vld [vmem:[%s212 + $0xc] sm:$0xf]
      %v234 = vld [vmem:[%s212 + $0x10] sm:$0x3]
      %v235 = vld [vmem:[%s215] sm:$0x1]
      %v237 = vlaneseq
      %v238 = vshrl.u32 %v237, 7
      %v239 = vsub.s32 0, %v238
      %v240 = vrot.slane %v235, %v239
      %v246 = vunpack.c.l.b16 %v226
      %v247 = vunpack.c.l.b16 %v227
      %v248 = vunpack.c.l.b16 %v228
      %v249 = vunpack.c.l.b16 %v229
      %v250 = vpack.c.b16 %v247, %v246
      %v251 = vpack.c.b16 %v249, %v248
      %v257 = vunpack.c.l.b16 %v230
      %v258 = vunpack.c.l.b16 %v231
      %v259 = vunpack.c.l.b16 %v232
      %v260 = vunpack.c.l.b16 %v233
      %v261 = vunpack.c.l.b16 %v234
      %v262 = vpack.c.b16 %v258, %v257
      %v263 = vpack.c.b16 %v260, %v259
      %v264 = vpack.c.b16 %v261, %v261
      %vm267 = vcmask 293888
      %v269 = vsel %vm267, %v250, 0
      %v272 = vsel %vm267, %v251, 0
      %vm274 = vcmask 1041408
      %v276 = vsel %vm274, %v264, 0
      %278 = vmatprep.subr.bf16.mxu0 0
      %279 = vmatpush1.bf16.msra.mxu0 %v262
      %280 = vmatprep.subr.bf16.mxu0 0
      %281 = vmatpush1.bf16.msra.mxu0 %v263
      %282 = vmatprep.subr.bf16.mxu0 0
      %283 = vmatpush1.bf16.msra.mxu0 %v276
      %284 = vmatprep.subr.bf16.mxu0 0
      %285 = vmatpush1.bf16.msra.mxu0 0
      %286 = vmatprep.subr.bf16.mxu0 0
      %287 = vmatpush1.bf16.msra.mxu0 0
      %288 = vmatprep.subr.bf16.mxu0 0
      %289 = vmatpush1.bf16.msra.mxu0 0
      %290 = vmatprep.subr.bf16.mxu0 0
      %291 = vmatpush1.bf16.msra.mxu0 0
      %292 = vmatprep.subr.bf16.mxu0 0
      %293 = vmatpush1.bf16.msra.mxu0 0
      %294 = vmatprep.subr.bf16.mxu0 0
      %295 = vmatpush1.bf16.msra.mxu0 0
      %296 = vmatprep.subr.bf16.mxu0 0
      %297 = vmatpush1.bf16.msra.mxu0 0
      %298 = vmatprep.subr.bf16.mxu0 0
      %299 = vmatpush1.bf16.msra.mxu0 0
      %300 = vmatprep.subr.bf16.mxu0 0
      %301 = vmatpush1.bf16.msra.mxu0 0
      %302 = vmatprep.subr.bf16.mxu0 0
      %303 = vmatpush1.bf16.msra.mxu0 0
      %304 = vmatprep.subr.bf16.mxu0 0
      %305 = vmatpush1.bf16.msra.mxu0 0
      %306 = vmatprep.subr.bf16.mxu0 0
      %307 = vmatpush1.bf16.msra.mxu0 0
      %308 = vmatprep.subr.bf16.mxu0 0
      %309 = vmatpush1.bf16.msra.mxu0 0
      %310 = vmatprep.mubr.bf16.mxu0 0
      %311 = vmatmul.mubr.bf16.gmra.mrb[0].mxu0 %v269
      %v312 = vpop.f32.mrb[0].mxu0
      %v313 = vadd.f32 %v240, %v312
      %v314 = vpop.f32.mrb[0].mxu0
      %v315 = vpop.f32.mrb[0].mxu0
      %v316 = vadd.f32 %v240, %v315
      %v317 = vpop.f32.mrb[0].mxu0
      %318 = vmatprep.mubr.bf16.mxu0 0
      %319 = vmatmul.mubr.bf16.gmra.mrb[0].mxu0 %v272
      %v320 = vpop.f32.mrb[0].mxu0
      %v321 = vadd.f32 %v240, %v320
      %v322 = vpop.f32.mrb[0].mxu0
      %v323 = vpop.f32.mrb[0].mxu0
      %v324 = vadd.f32 %v240, %v323
      %v325 = vpop.f32.mrb[0].mxu0
      %326 = vdwg.mxu0
      %v327 = vmax.f32 %v313, 0.0
      %v328 = vmax.f32 %v316, 0.0
      %v329 = vmax.f32 %v321, 0.0
      %v330 = vmax.f32 %v324, 0.0
      %v331 = vpack.c.bf16 %v328, %v327
      %v332 = vpack.c.bf16 %v330, %v329
      %v335 = vunpack.c.l.b16 %v331
      %v336 = vunpack.c.h.b16 %v331
      %v337 = vunpack.c.l.b16 %v332
      %v338 = vunpack.c.h.b16 %v332
      %v339 = vpack.c.b16 %v335, %v335
      %v340 = vpack.c.b16 %v336, %v336
      %v341 = vpack.c.b16 %v337, %v337
      %v342 = vpack.c.b16 %v338, %v338
      %vm347 = vcmask 60416
      %348 = vst.msk [vmem:[%s223] sm:$0xf] %vm347, %v339
      %349 = vst.msk [vmem:[%s223 + $0x4] sm:$0xf] %vm347, %v340
      %350 = vst.msk [vmem:[%s223 + $0x8] sm:$0xf] %vm347, %v341
      %351 = vst.msk [vmem:[%s223 + $0xc] sm:$0xf] %vm347, %v342
      %s352 = smul.u32 4, %s18
      %p353 = scmp.lt.s32.totalorder %s352, 15
      %s354 = scalar_select %p353, %s352, 15
      %p355 = scmp.lt.s32.totalorder %s19, 0
      %s356 = scalar_select %p355, %s19, 0
      %s357 = sadd.s32 %s356, %s354
      %s358 = smul.addr %s357, 4
      %s359 = scalar_lea.vmem %s3, %s358
      // Predicated region
      $region33: #{residual_block_forward.2} parent=31 // pred_check
        %p360 = pneg %p124
      $region34: #{residual_block_forward.2} parent=31 // pred_check_branch
        %362 = sbr.rel (%p360) target = $region36
      $region35: #{residual_block_forward.2} parent=31 // pred_region
        %s363 = smul.u32 4, %s18
      $region36: #{residual_block_forward.2} parent=31 // pred_fallthru
        _
    $region32: #{residual_block_forward.2} parent=5 // pred_fallthru
      _
    %p364 = scmp.le.s32.totalorder 2, %s9
    // Predicated region
    $region37: #{residual_block_forward.2} parent=5 // pred_check
      %p365 = pneg %p364
    $region38: #{residual_block_forward.2} parent=5 // pred_check_branch
      %367 = sbr.rel (%p365) target = $region40
    $region39: #{residual_block_forward.2} parent=5 // pred_region
      %s368 = ssub.s32 %s9, 2
      // Predicated region
      $region41: #{residual_block_forward.2} parent=39 // pred_check
        %p369 = pneg %p130
      $region42: #{residual_block_forward.2} parent=39 // pred_check_branch
        %371 = sbr.rel (%p369) target = $region44
      $region43: #{residual_block_forward.2} parent=39 // pred_region
        %s372 = smul.u32 4, %s20
        %p373 = scmp.lt.s32.totalorder %s372, 15
        %s374 = scalar_select %p373, %s372, 15
        %p375 = scmp.lt.s32.totalorder %s21, 0
        %s376 = scalar_select %p375, %s21, 0
        %s377 = sadd.s32 %s376, %s374
        %s378 = smul.addr %s377, 4
        %s379 = scalar_lea.vmem %s3, %s378
      $region44: #{residual_block_forward.2} parent=39 // pred_fallthru
        _
    $region40: #{residual_block_forward.2} parent=5 // pred_fallthru
      _
  $region6: #{residual_block_forward.2} parent=0 // loop_footer
    %s13 = sadd.s32 1, %s9
  $region7: #{residual_block_forward.2} parent=0 // loop_footer_branch
    %8 = sbr.rel target = $region3
  $region8: #{residual_block_forward.2} parent=0 // loop_exit
    _

// kernel: residual_block_forward.3
$region0: #{residual_block_forward.3}
  #allocation0 [shape = 'u32[]', space=smem, size = 0x4, offset = 0x4, fixed_abs, tag = 'smem constant byte address 0x4 - core index']
  #allocation1 [shape = 'u32[144,128]{1,0:T(1,128)}', space=vmem, size = 0x12000, scoped, tag = 'internal scratch']
  %s0 = inlined_call_operand.vmem [shape: bf16[128,76], index: 0, kind: input, shape index: {}]
  %s1 = inlined_call_operand.vmem [shape: bf16[76,8], index: 1, kind: input, shape index: {}]
  %s2 = inlined_call_operand.vmem [shape: f32[1,8], index: 2, kind: input, shape index: {}]
  %s3 = inlined_call_operand.vmem [shape: bf16[128,8], index: 3, kind: output, shape index: {}]
  %s4 = sld [smem:[#allocation0]]
  $region45: #{residual_block_forward.3} parent=0
    _
  %s6 = ssub.s32 1, %s4
  %s7 = scalar_select 0, %s6, %s4
  loop: start=0, step=1, limit=6
  $region2: #{residual_block_forward.3} parent=0 // loop_pre_header
    _
  $region3: #{residual_block_forward.3} parent=0 // loop_header
    %s9 = sphi 0, %s13
    %p10 = scmp.ge.s32.totalorder %s9, 6
    %s16 = sphi 0, %s28
    %s17 = sphi 0, %s24
    %s18 = sphi 0, %s16
    %s19 = sphi 0, %s17
    %s20 = sphi 0, %s18
    %s21 = sphi 0, %s19
    %s31 = sphi 0, %s33
    %s34 = sphi 0, %s31
    %s35 = sphi 0, %s34
    %s51 = sphi 0, %s35
    %s57 = sphi 0, %s59
    %s60 = sphi 0, %s57
    %s61 = sphi 0, %s60
    %s77 = sphi 0, %s61
    %s83 = sphi 0, %s85
    %s86 = sphi 0, %s83
    %s87 = sphi 0, %s86
    %s103 = sphi 0, %s87
    %s111 = sphi 0, %s113
    %s114 = sphi 0, %s111
    %s115 = sphi 0, %s114
    %s131 = sphi 0, %s115
  $region4: #{residual_block_forward.3} parent=0 // loop_header_branch
    %12 = sbr.rel (%p10) target = $region8
  $region5: #{residual_block_forward.3} parent=0 // loop_body
    %s14 = ssub.s32 %s9, 1
    %s15 = ssub.s32 %s9, 2
    %s22 = sadd.s32 1, %s17
    %p23 = scmp.ge.s32.totalorder %s22, 1
    %s24 = scalar_select %p23, 0, %s22
    %s25 = sadd.s32 1, %s16
    %s26 = scalar_select %p23, %s25, %s16
    %p27 = scmp.ge.s32.totalorder %s26, 4
    %s28 = scalar_select %p27, 0, %s26
    %s29 = ssub.s32 %s16, %s28
    %p30 = scmp.eq.s32.totalorder %s29, 0
    %s32 = sadd.s32 %s31, 1
    %s33 = scalar_select %p30, %s31, %s32
    %p36 = pneg %p30
    %p37 = scmp.eq.s32.totalorder %s9, 3
    %p38 = por %p36, %p37
    %p39 = scmp.ne.s32.totalorder %s31, %s34
    %p40 = scmp.eq.s32.totalorder %s9, 0
    %p41 = por %p39, %p40
    %p42 = scmp.ne.s32.totalorder %s31, %s34
    %p43 = scmp.eq.s32.totalorder %s14, 3
    %p44 = por %p42, %p43
    %p45 = scmp.ne.s32.totalorder %s34, %s35
    %p46 = scmp.eq.s32.totalorder %s14, 0
    %p47 = por %p45, %p46
    %p48 = scmp.ne.s32.totalorder %s34, %s35
    %p49 = scmp.eq.s32.totalorder %s15, 3
    %p50 = por %p48, %p49
    %p52 = scmp.ne.s32.totalorder %s35, %s51
    %p53 = scmp.eq.s32.totalorder %s15, 0
    %p54 = por %p52, %p53
    %s55 = ssub.s32 %s17, %s24
    %p56 = scmp.eq.s32.totalorder %s55, 0
    %s58 = sadd.s32 %s57, 1
    %s59 = scalar_select %p56, %s57, %s58
    %p62 = pneg %p56
    %p63 = scmp.eq.s32.totalorder %s9, 3
    %p64 = por %p62, %p63
    %p65 = scmp.ne.s32.totalorder %s57, %s60
    %p66 = scmp.eq.s32.totalorder %s9, 0
    %p67 = por %p65, %p66
    %p68 = scmp.ne.s32.totalorder %s57, %s60
    %p69 = scmp.eq.s32.totalorder %s14, 3
    %p70 = por %p68, %p69
    %p71 = scmp.ne.s32.totalorder %s60, %s61
    %p72 = scmp.eq.s32.totalorder %s14, 0
    %p73 = por %p71, %p72
    %p74 = scmp.ne.s32.totalorder %s60, %s61
    %p75 = scmp.eq.s32.totalorder %s15, 3
    %p76 = por %p74, %p75
    %p78 = scmp.ne.s32.totalorder %s61, %s77
    %p79 = scmp.eq.s32.totalorder %s15, 0
    %p80 = por %p78, %p79
    %s81 = ssub.s32 %s17, %s24
    %p82 = scmp.eq.s32.totalorder %s81, 0
    %s84 = sadd.s32 %s83, 1
    %s85 = scalar_select %p82, %s83, %s84
    %p88 = pneg %p82
    %p89 = scmp.eq.s32.totalorder %s9, 3
    %p90 = por %p88, %p89
    %p91 = scmp.ne.s32.totalorder %s83, %s86
    %p92 = scmp.eq.s32.totalorder %s9, 0
    %p93 = por %p91, %p92
    %p94 = scmp.ne.s32.totalorder %s83, %s86
    %p95 = scmp.eq.s32.totalorder %s14, 3
    %p96 = por %p94, %p95
    %p97 = scmp.ne.s32.totalorder %s86, %s87
    %p98 = scmp.eq.s32.totalorder %s14, 0
    %p99 = por %p97, %p98
    %p100 = scmp.ne.s32.totalorder %s86, %s87
    %p101 = scmp.eq.s32.totalorder %s15, 3
    %p102 = por %p100, %p101
    %p104 = scmp.ne.s32.totalorder %s87, %s103
    %p105 = scmp.eq.s32.totalorder %s15, 0
    %p106 = por %p104, %p105
    %s107 = ssub.s32 %s16, %s28
    %s108 = ssub.s32 %s17, %s24
    %s109 = sor.u32 %s107, %s108
    %p110 = scmp.eq.s32.totalorder %s109, 0
    %s112 = sadd.s32 %s111, 1
    %s113 = scalar_select %p110, %s111, %s112
    %p116 = pneg %p110
    %p117 = scmp.eq.s32.totalorder %s9, 3
    %p118 = por %p116, %p117
    %p119 = scmp.ne.s32.totalorder %s111, %s114
    %p120 = scmp.eq.s32.totalorder %s9, 0
    %p121 = por %p119, %p120
    %p122 = scmp.ne.s32.totalorder %s111, %s114
    %p123 = scmp.eq.s32.totalorder %s14, 3
    %p124 = por %p122, %p123
    %p125 = scmp.ne.s32.totalorder %s114, %s115
    %p126 = scmp.eq.s32.totalorder %s14, 0
    %p127 = por %p125, %p126
    %p128 = scmp.ne.s32.totalorder %s114, %s115
    %p129 = scmp.eq.s32.totalorder %s15, 3
    %p130 = por %p128, %p129
    %p132 = scmp.ne.s32.totalorder %s115, %s131
    %p133 = scmp.eq.s32.totalorder %s15, 0
    %p134 = por %p132, %p133
    %p135 = scmp.le.s32.totalorder 1, %s9
    %p136 = scmp.lt.s32.totalorder %s9, 5
    %p137 = pnand %p135, %p136
    %p138 = pneg %p137
    // Predicated region
    $region9: #{residual_block_forward.3} parent=5 // pred_check
      _
    $region10: #{residual_block_forward.3} parent=5 // pred_check_branch
      %140 = sbr.rel (%p137) target = $region12
    $region11: #{residual_block_forward.3} parent=5 // pred_region
      %s141 = ssub.s32 %s9, 1
      // Predicated region
      $region13: #{residual_block_forward.3} parent=11 // pred_check
        %p142 = pneg %p73
      $region14: #{residual_block_forward.3} parent=11 // pred_check_branch
        %144 = sbr.rel (%p142) target = $region16
      $region15: #{residual_block_forward.3} parent=11 // pred_region
        %p145 = scmp.lt.s32.totalorder %s19, 0
        %s146 = scalar_select %p145, %s19, 0
        %s147 = smul.addr %s146, 4
        %s148 = scalar_lea.vmem %s1, %s147
      $region16: #{residual_block_forward.3} parent=11 // pred_fallthru
        _
      // Predicated region
      $region17: #{residual_block_forward.3} parent=11 // pred_check
        %p149 = pneg %p99
      $region18: #{residual_block_forward.3} parent=11 // pred_check_branch
        %151 = sbr.rel (%p149) target = $region20
      $region19: #{residual_block_forward.3} parent=11 // pred_region
        %p152 = scmp.lt.s32.totalorder %s19, 0
        %s153 = scalar_select %p152, %s19, 0
        %s154 = scalar_lea.vmem %s2, %s153
      $region20: #{residual_block_forward.3} parent=11 // pred_fallthru
        _
    $region12: #{residual_block_forward.3} parent=5 // pred_fallthru
      _
    %p155 = scmp.lt.s32.totalorder %s9, 4
    // Predicated region
    $region21: #{residual_block_forward.3} parent=5 // pred_check
      %p156 = pneg %p155
    $region22: #{residual_block_forward.3} parent=5 // pred_check_branch
      %158 = sbr.rel (%p156) target = $region24
    $region23: #{residual_block_forward.3} parent=5 // pred_region
      // Predicated region
      $region25: #{residual_block_forward.3} parent=23 // pred_check
        %p159 = pneg %p41
      $region26: #{residual_block_forward.3} parent=23 // pred_check_branch
        %161 = sbr.rel (%p159) target = $region28
      $region27: #{residual_block_forward.3} parent=23 // pred_region
        %s162 = smul.u32 4, %s16
        %p163 = scmp.lt.s32.totalorder %s162, 15
        %s164 = scalar_select %p163, %s162, 15
        %s165 = smul.addr %s164, 4
        %s166 = scalar_lea.vmem %s0, %s165
        %s167 = smul.u32 4, %s16
      $region28: #{residual_block_forward.3} parent=23 // pred_fallthru
        _
    $region24: #{residual_block_forward.3} parent=5 // pred_fallthru
      _
    %p168 = scmp.le.s32.totalorder 1, %s9
    %p169 = scmp.lt.s32.totalorder %s9, 5
    %p170 = pnand %p168, %p169
    %p171 = pneg %p170
    // Predicated region
    $region29: #{residual_block_forward.3} parent=5 // pred_check
      _
    $region30: #{residual_block_forward.3} parent=5 // pred_check_branch
      %173 = sbr.rel (%p170) target = $region32
    $region31: #{residual_block_forward.3} parent=5 // pred_region
      %s174 = ssub.s32 %s9, 1
      %s175 = smul.u32 4, %s18
      %p176 = scmp.lt.s32.totalorder %s175, 15
      %s177 = scalar_select %p176, %s175, 15
      %s178 = smul.addr %s177, 4
      %s179 = scalar_lea.vmem %s0, %s178
      %p180 = pneg %p47
      %p181 = pneg %p44
      %p182 = scmp.lt.s32.totalorder %s19, 0
      %s183 = scalar_select %p182, %s19, 0
      %s184 = smul.addr %s183, 4
      %s185 = scalar_lea.vmem %s1, %s184
      %p186 = pneg %p73
      %p187 = pneg %p70
      %p188 = scmp.lt.s32.totalorder %s19, 0
      %s189 = scalar_select %p188, %s19, 0
      %s190 = scalar_lea.vmem %s2, %s189
      %p191 = pneg %p99
      %p192 = pneg %p96
      %p193 = pneg %p127
      %p194 = pneg %p124
      %s195 = smul.u32 4, %s18
      %p196 = scmp.lt.s32.totalorder %s195, 15
      %s197 = scalar_select %p196, %s195, 15
      %p198 = scmp.lt.s32.totalorder %s19, 0
      %s199 = scalar_select %p198, %s19, 0
      %s200 = sadd.s32 %s199, %s197
      %s201 = smul.addr %s200, 4
      %s202 = scalar_lea.vmem %s3, %s201
      %s203 = smul.u32 4, %s18
      %p204 = scmp.lt.s32.totalorder %s203, 15
      %s205 = scalar_select %p204, %s203, 15
      %s206 = smul.addr %s205, 4
      %s207 = scalar_lea.vmem %s0, %s206
      %s208 = smul.u32 4, %s18
      %p209 = scmp.lt.s32.totalorder %s19, 0
      %s210 = scalar_select %p209, %s19, 0
      %s211 = smul.addr %s210, 4
      %s212 = scalar_lea.vmem %s1, %s211
      %p213 = scmp.lt.s32.totalorder %s19, 0
      %s214 = scalar_select %p213, %s19, 0
      %s215 = scalar_lea.vmem %s2, %s214
      %s216 = smul.u32 4, %s18
      %p217 = scmp.lt.s32.totalorder %s216, 15
      %s218 = scalar_select %p217, %s216, 15
      %p219 = scmp.lt.s32.totalorder %s19, 0
      %s220 = scalar_select %p219, %s19, 0
      %s221 = sadd.s32 %s220, %s218
      %s222 = smul.addr %s221, 4
      %s223 = scalar_lea.vmem %s3, %s222
      %s224 = smul.u32 4, %s18
      %v226 = vld [vmem:[%s207] sm:$0xf]
      %v227 = vld [vmem:[%s207 + $0x4] sm:$0xf]
      %v228 = vld [vmem:[%s207 + $0x8] sm:$0xf]
      %v229 = vld [vmem:[%s207 + $0xc] sm:$0xf]
      %v230 = vld [vmem:[%s212] sm:$0xf]
      %v231 = vld [vmem:[%s212 + $0x4] sm:$0xf]
      %v232 = vld [vmem:[%s212 + $0x8] sm:$0xf]
      %v233 = vld [vmem:[%s212 + $0xc] sm:$0xf]
      %v234 = vld [vmem:[%s212 + $0x10] sm:$0xf]
      %v235 = vld [vmem:[%s212 + $0x14] sm:$0xf]
      %v236 = vld [vmem:[%s212 + $0x18] sm:$0xf]
      %v237 = vld [vmem:[%s212 + $0x1c] sm:$0xf]
      %v238 = vld [vmem:[%s212 + $0x20] sm:$0xf]
      %v239 = vld [vmem:[%s212 + $0x24] sm:$0x3]
      %v240 = vld [vmem:[%s215] sm:$0x1]
      %v242 = vlaneseq
      %v243 = vshrl.u32 %v242, 7
      %v244 = vsub.s32 0, %v243
      %v245 = vrot.slane %v240, %v244
      %v251 = vunpack.c.l.b16 %v226
      %v252 = vunpack.c.l.b16 %v227
      %v253 = vunpack.c.l.b16 %v228
      %v254 = vunpack.c.l.b16 %v229
      %v255 = vpack.c.b16 %v252, %v251
      %v256 = vpack.c.b16 %v254, %v253
      %v267 = vunpack.c.l.b16 %v230
      %v268 = vunpack.c.l.b16 %v231
      %v269 = vunpack.c.l.b16 %v232
      %v270 = vunpack.c.l.b16 %v233
      %v271 = vunpack.c.l.b16 %v234
      %v272 = vunpack.c.l.b16 %v235
      %v273 = vunpack.c.l.b16 %v236
      %v274 = vunpack.c.l.b16 %v237
      %v275 = vunpack.c.l.b16 %v238
      %v276 = vunpack.c.l.b16 %v239
      %v277 = vpack.c.b16 %v268, %v267
      %v278 = vpack.c.b16 %v270, %v269
      %v279 = vpack.c.b16 %v272, %v271
      %v280 = vpack.c.b16 %v274, %v273
      %v281 = vpack.c.b16 %v276, %v275
      %vm286 = vcmask 621568
      %v288 = vsel %vm286, %v255, 0
      %v291 = vsel %vm286, %v256, 0
      %vm293 = vcmask 1045504
      %v295 = vsel %vm293, %v281, 0
      %297 = vmatprep.subr.bf16.mxu0 0
      %298 = vmatpush1.bf16.msra.mxu0 %v277
      %299 = vmatprep.subr.bf16.mxu0 0
      %300 = vmatpush1.bf16.msra.mxu0 %v278
      %301 = vmatprep.subr.bf16.mxu0 0
      %302 = vmatpush1.bf16.msra.mxu0 %v279
      %303 = vmatprep.subr.bf16.mxu0 0
      %304 = vmatpush1.bf16.msra.mxu0 %v280
      %305 = vmatprep.subr.bf16.mxu0 0
      %306 = vmatpush1.bf16.msra.mxu0 %v295
      %307 = vmatprep.subr.bf16.mxu0 0
      %308 = vmatpush1.bf16.msra.mxu0 0
      %309 = vmatprep.subr.bf16.mxu0 0
      %310 = vmatpush1.bf16.msra.mxu0 0
      %311 = vmatprep.subr.bf16.mxu0 0
      %312 = vmatpush1.bf16.msra.mxu0 0
      %313 = vmatprep.subr.bf16.mxu0 0
      %314 = vmatpush1.bf16.msra.mxu0 0
      %315 = vmatprep.subr.bf16.mxu0 0
      %316 = vmatpush1.bf16.msra.mxu0 0
      %317 = vmatprep.subr.bf16.mxu0 0
      %318 = vmatpush1.bf16.msra.mxu0 0
      %319 = vmatprep.subr.bf16.mxu0 0
      %320 = vmatpush1.bf16.msra.mxu0 0
      %321 = vmatprep.subr.bf16.mxu0 0
      %322 = vmatpush1.bf16.msra.mxu0 0
      %323 = vmatprep.subr.bf16.mxu0 0
      %324 = vmatpush1.bf16.msra.mxu0 0
      %325 = vmatprep.subr.bf16.mxu0 0
      %326 = vmatpush1.bf16.msra.mxu0 0
      %327 = vmatprep.subr.bf16.mxu0 0
      %328 = vmatpush1.bf16.msra.mxu0 0
      %329 = vmatprep.mubr.bf16.mxu0 0
      %330 = vmatmul.mubr.bf16.gmra.mrb[0].mxu0 %v288
      %v331 = vpop.f32.mrb[0].mxu0
      %v332 = vadd.f32 %v245, %v331
      %v333 = vpop.f32.mrb[0].mxu0
      %v334 = vpop.f32.mrb[0].mxu0
      %v335 = vadd.f32 %v245, %v334
      %v336 = vpop.f32.mrb[0].mxu0
      %337 = vmatprep.mubr.bf16.mxu0 0
      %338 = vmatmul.mubr.bf16.gmra.mrb[0].mxu0 %v291
      %v339 = vpop.f32.mrb[0].mxu0
      %v340 = vadd.f32 %v245, %v339
      %v341 = vpop.f32.mrb[0].mxu0
      %v342 = vpop.f32.mrb[0].mxu0
      %v343 = vadd.f32 %v245, %v342
      %v344 = vpop.f32.mrb[0].mxu0
      %345 = vdwg.mxu0
      %v346 = vmax.f32 %v332, 0.0
      %v347 = vmax.f32 %v335, 0.0
      %v348 = vmax.f32 %v340, 0.0
      %v349 = vmax.f32 %v343, 0.0
      %v350 = vpack.c.bf16 %v347, %v346
      %v351 = vpack.c.bf16 %v349, %v348
      %v354 = vunpack.c.l.b16 %v350
      %v355 = vunpack.c.h.b16 %v350
      %v356 = vunpack.c.l.b16 %v351
      %v357 = vunpack.c.h.b16 %v351
      %v358 = vpack.c.b16 %v354, %v354
      %v359 = vpack.c.b16 %v355, %v355
      %v360 = vpack.c.b16 %v356, %v356
      %v361 = vpack.c.b16 %v357, %v357
      %vm366 = vcmask 60416
      %367 = vst.msk [vmem:[%s223] sm:$0xf] %vm366, %v358
      %368 = vst.msk [vmem:[%s223 + $0x4] sm:$0xf] %vm366, %v359
      %369 = vst.msk [vmem:[%s223 + $0x8] sm:$0xf] %vm366, %v360
      %370 = vst.msk [vmem:[%s223 + $0xc] sm:$0xf] %vm366, %v361
      %s371 = smul.u32 4, %s18
      %p372 = scmp.lt.s32.totalorder %s371, 15
      %s373 = scalar_select %p372, %s371, 15
      %p374 = scmp.lt.s32.totalorder %s19, 0
      %s375 = scalar_select %p374, %s19, 0
      %s376 = sadd.s32 %s375, %s373
      %s377 = smul.addr %s376, 4
      %s378 = scalar_lea.vmem %s3, %s377
      // Predicated region
      $region33: #{residual_block_forward.3} parent=31 // pred_check
        %p379 = pneg %p124
      $region34: #{residual_block_forward.3} parent=31 // pred_check_branch
        %381 = sbr.rel (%p379) target = $region36
      $region35: #{residual_block_forward.3} parent=31 // pred_region
        %s382 = smul.u32 4, %s18
      $region36: #{residual_block_forward.3} parent=31 // pred_fallthru
        _
    $region32: #{residual_block_forward.3} parent=5 // pred_fallthru
      _
    %p383 = scmp.le.s32.totalorder 2, %s9
    // Predicated region
    $region37: #{residual_block_forward.3} parent=5 // pred_check
      %p384 = pneg %p383
    $region38: #{residual_block_forward.3} parent=5 // pred_check_branch
      %386 = sbr.rel (%p384) target = $region40
    $region39: #{residual_block_forward.3} parent=5 // pred_region
      %s387 = ssub.s32 %s9, 2
      // Predicated region
      $region41: #{residual_block_forward.3} parent=39 // pred_check
        %p388 = pneg %p130
      $region42: #{residual_block_forward.3} parent=39 // pred_check_branch
        %390 = sbr.rel (%p388) target = $region44
      $region43: #{residual_block_forward.3} parent=39 // pred_region
        %s391 = smul.u32 4, %s20
        %p392 = scmp.lt.s32.totalorder %s391, 15
        %s393 = scalar_select %p392, %s391, 15
        %p394 = scmp.lt.s32.totalorder %s21, 0
        %s395 = scalar_select %p394, %s21, 0
        %s396 = sadd.s32 %s395, %s393
        %s397 = smul.addr %s396, 4
        %s398 = scalar_lea.vmem %s3, %s397
      $region44: #{residual_block_forward.3} parent=39 // pred_fallthru
        _
    $region40: #{residual_block_forward.3} parent=5 // pred_fallthru
      _
  $region6: #{residual_block_forward.3} parent=0 // loop_footer
    %s13 = sadd.s32 1, %s9
  $region7: #{residual_block_forward.3} parent=0 // loop_footer_branch
    %8 = sbr.rel target = $region3
  $region8: #{residual_block_forward.3} parent=0 // loop_exit
    _

</llo_original>
